<compile_context>
chip_gen: v6e
topology: v6e:2x2x1
jax: 0.10.0
libtpu: 0.0.40
codegen_flags: <defaults>
</compile_context>

<pallas_src>
import functools
import math

import jax
import jax.numpy as jnp
from jax.experimental import pallas as pl
from jax.experimental.pallas import tpu as pltpu


def _head_kernel(x_ref, wqkv_ref, bqkv_ref, o_ref):
    """One grid step == one block of Bt batch elements.

    x_ref    : (Bt, T, C)   VMEM tile
    wqkv_ref : (C, 3*Hp)    fused [Wq*scale | Wk | Wv] (H padded to Hp lanes)
    bqkv_ref : (1, 3*Hp)    fused biases
    o_ref    : (Bt, T, Hp)  output tile (lane-dense, padded)
    """
    Bt, T, C = x_ref.shape
    Hp = o_ref.shape[-1]

    # Single fused projection: (Bt*T, C) @ (C, 3*Hp) on the MXU.  The reshape
    # only collapses leading (non-lane) dims, so it is layout-cheap.
    x2d = x_ref[...].reshape(Bt * T, C)
    qkv = jnp.dot(x2d, wqkv_ref[...], preferred_element_type=jnp.float32)
    qkv = qkv + bqkv_ref[...]                       # broadcast (1, 3*Hp)
    qkv = qkv.reshape(Bt, T, 3 * Hp)

    # Lane-aligned slices (offsets are multiples of 128).
    q = qkv[:, :, 0 * Hp:1 * Hp]                    # already scaled by 1/sqrt(H)
    k = qkv[:, :, 1 * Hp:2 * Hp]
    v = qkv[:, :, 2 * Hp:3 * Hp]

    # Batched scores, contracting on the last dim (no explicit transpose).
    scores = jax.lax.dot_general(
        q, k,
        dimension_numbers=(((2,), (2,)), ((0,), (0,))),
        preferred_element_type=jnp.float32)         # (Bt, T, T)

    # Causal mask (diagonal kept -> denominator never zero).
    row = jax.lax.broadcasted_iota(jnp.int32, (T, T), 0)
    col = jax.lax.broadcasted_iota(jnp.int32, (T, T), 1)
    causal = (col <= row)[None]                     # (1, T, T)
    scores = jnp.where(causal, scores, jnp.float32(-1e30))

    # Numerically-stable softmax; reciprocal goes to the EUP slot (free-ish).
    m = jnp.max(scores, axis=-1, keepdims=True)
    p = jnp.exp(scores - m)
    denom = jnp.sum(p, axis=-1, keepdims=True)
    p = p * pl.reciprocal(denom, approx=True)       # (Bt, T, T)

    # Weighted sum of values: batched (T, T) @ (T, Hp).
    o = jax.lax.dot_general(
        p, v,
        dimension_numbers=(((2,), (1,)), ((0,), (0,))),
        preferred_element_type=jnp.float32)         # (Bt, T, Hp)
    o_ref[...] = o.astype(o_ref.dtype)


@functools.partial(jax.jit, static_argnames=("batch_block",))
def multihead_forward(x, wq, wk, wv, bq, bk, bv, *, batch_block=None):
    """x: (B, T, C) f32 -> (B, T, H) f32 (single causal attention head)."""
    B, T, C = x.shape
    H = wq.shape[1]

    # Pad head dim up to a lane-dense multiple of 128 (padded columns are zero
    # in W/b, hence zero in q/k/v and in the output -> sliced off at the end).
    Hp = ((H + 127) // 128) * 128
    pad = Hp - H
    scale = jnp.float32(1.0 / math.sqrt(H))         # fold scale into Wq/bq

    def pad_w(w):
        return jnp.pad(w, ((0, 0), (0, pad))) if pad else w

    def pad_b(b):
        return jnp.pad(b, ((0, 0), (0, pad))) if pad else b

    wqkv = jnp.concatenate([pad_w(wq * scale), pad_w(wk), pad_w(wv)], axis=1)
    bqkv = jnp.concatenate([pad_b(bq * scale), pad_b(bk), pad_b(bv)], axis=1)

    if batch_block is None:
        # Aim for ~256 MXU rows (Bt*T) per grid step to amortize per-step
        # overhead; keep >= 2 grid steps (v7x megacore) only if each step
        # would still feed the MXU >= 128 rows.
        batch_block = min(B, max(1, 256 // max(T, 1)))
        if B // batch_block < 2 and B >= 2 and (B // 2) * T >= 128:
            batch_block = B // 2
        while B % batch_block:
            batch_block -= 1
    Bt = batch_block

    out_p = pl.pallas_call(
        _head_kernel,
        out_shape=jax.ShapeDtypeStruct((B, T, Hp), jnp.float32),
        grid_spec=pl.GridSpec(
            grid=(B // Bt,),
            in_specs=[
                pl.BlockSpec((Bt, T, C), lambda b: (b, 0, 0)),     # x
                pl.BlockSpec((C, 3 * Hp), lambda b: (0, 0)),       # fused W
                pl.BlockSpec((1, 3 * Hp), lambda b: (0, 0)),       # fused b
            ],
            out_specs=pl.BlockSpec((Bt, T, Hp), lambda b: (b, 0, 0)),
        ),
        compiler_params=pltpu.CompilerParams(
            dimension_semantics=("parallel",)),
    )(x, wqkv, bqkv)

    return out_p[:, :, :H] if pad else out_p


def _reference(x, wq, wk, wv, bq, bk, bv):
    """Pure-JAX reference of the same attention head (sanity check)."""
    q = x @ wq + bq            # (B, T, H)
    k = x @ wk + bk
    v = x @ wv + bv
    H = q.shape[-1]
    s = jnp.einsum("btd,bsd->bts", q, k) / math.sqrt(H)
    T = x.shape[1]
    mask = jnp.tril(jnp.ones((T, T), dtype=bool))
    s = jnp.where(mask[None], s, -jnp.inf)
    p = jax.nn.softmax(s, axis=-1)
    return jnp.einsum("bts,bsd->btd", p, v)


if __name__ == "__main__":
    # Small shapes consistent with ModelArg: emb_size=32, head_size=64.
    B, T, C, H = 2, 8, 32, 64

    key = jax.random.PRNGKey(0)
    kx, kq, kk, kv, kbq, kbk, kbv = jax.random.split(key, 7)

    x = jax.random.normal(kx, (B, T, C), dtype=jnp.float32)

    # Deterministic parameter init (Linear-style uniform in +/- 1/sqrt(fan_in)).
    bound = 1.0 / math.sqrt(C)
    wq = jax.random.uniform(kq, (C, H), jnp.float32, -bound, bound)
    wk = jax.random.uniform(kk, (C, H), jnp.float32, -bound, bound)
    wv = jax.random.uniform(kv, (C, H), jnp.float32, -bound, bound)
    bq = jax.random.uniform(kbq, (1, H), jnp.float32, -bound, bound)
    bk = jax.random.uniform(kbk, (1, H), jnp.float32, -bound, bound)
    bv = jax.random.uniform(kbv, (1, H), jnp.float32, -bound, bound)

    out = multihead_forward(x, wq, wk, wv, bq, bk, bv)
    out = jax.block_until_ready(out)

    ref = _reference(x, wq, wk, wv, bq, bk, bv)
    assert out.shape == (B, T, H)
    # Tolerance accounts for pl.reciprocal(approx=True) in the softmax
    # denominator (EUP estimate, ~1e-3-level relative error bound).
    assert jnp.allclose(out, ref, atol=2e-3, rtol=2e-3), (
        float(jnp.max(jnp.abs(out - ref))))

    print("KERNEL_OK")
</pallas_src>

<mosaic_0001>
module attributes {stable_mosaic.version = 11 : i64} {
  func.func @_head_kernel(%arg0: i32, %arg1: memref<2x8x32xf32, #tpu.memory_space<vmem>>, %arg2: memref<32x384xf32, #tpu.memory_space<vmem>>, %arg3: memref<1x384xf32, #tpu.memory_space<vmem>>, %arg4: memref<2x8x128xf32, #tpu.memory_space<vmem>>) attributes {dimension_semantics = [#tpu.dimension_semantics<parallel>], iteration_bounds = array<i64: 1>, scalar_prefetch = 0 : i64, scratch_operands = 0 : i64, tpu.core_type = #tpu.core_type<tc>, window_params = [{transform_indices = @transform_0, window_bounds = array<i64: 2, 8, 32>}, {pipeline_mode = #tpu.pipeline_mode<synchronous>, transform_indices = @transform_1, window_bounds = array<i64: 32, 384>}, {pipeline_mode = #tpu.pipeline_mode<synchronous>, transform_indices = @transform_2, window_bounds = array<i64: 1, 384>}, {transform_indices = @transform_3, window_bounds = array<i64: 2, 8, 128>}]} {
    %c0 = arith.constant 0 : index
    %c0_0 = arith.constant 0 : index
    %c0_1 = arith.constant 0 : index
    %0 = vector.load %arg1[%c0, %c0_0, %c0_1] : memref<2x8x32xf32, #tpu.memory_space<vmem>>, vector<2x8x32xf32>
    %1 = vector.shape_cast %0 : vector<2x8x32xf32> to vector<16x32xf32>
    %c0_2 = arith.constant 0 : index
    %c0_3 = arith.constant 0 : index
    %2 = vector.load %arg2[%c0_2, %c0_3] : memref<32x384xf32, #tpu.memory_space<vmem>>, vector<32x384xf32>
    %cst = arith.constant dense<0.000000e+00> : vector<16x384xf32>
    %3 = tpu.matmul %1, %2, %cst {dimension_numbers = #tpu.dot_dimension_numbers<[1], [0], [0], [1], [0, 0, 1, 1], [], []>} : vector<16x32xf32>, vector<32x384xf32>, vector<16x384xf32> -> vector<16x384xf32>
    %c0_4 = arith.constant 0 : index
    %c0_5 = arith.constant 0 : index
    %4 = vector.load %arg3[%c0_4, %c0_5] : memref<1x384xf32, #tpu.memory_space<vmem>>, vector<1x384xf32>
    %5 = vector.broadcast %4 : vector<1x384xf32> to vector<16x384xf32>
    %6 = arith.addf %3, %5 : vector<16x384xf32>
    %7 = vector.shape_cast %6 : vector<16x384xf32> to vector<2x8x384xf32>
    %8 = vector.extract_strided_slice %7 {offsets = [0, 0, 0], sizes = [2, 8, 128], strides = [1, 1, 1]} : vector<2x8x384xf32> to vector<2x8x128xf32>
    %9 = vector.extract_strided_slice %7 {offsets = [0, 0, 128], sizes = [2, 8, 128], strides = [1, 1, 1]} : vector<2x8x384xf32> to vector<2x8x128xf32>
    %10 = vector.extract_strided_slice %7 {offsets = [0, 0, 256], sizes = [2, 8, 128], strides = [1, 1, 1]} : vector<2x8x384xf32> to vector<2x8x128xf32>
    %cst_6 = arith.constant dense<0.000000e+00> : vector<2x8x8xf32>
    %11 = tpu.matmul %8, %9, %cst_6 {dimension_numbers = #tpu.dot_dimension_numbers<[2], [2], [1], [1], [0, 0, 0, 1, 1, 1], [0], [0]>} : vector<2x8x128xf32>, vector<2x8x128xf32>, vector<2x8x8xf32> -> vector<2x8x8xf32>
    %12 = tpu.iota {dimensions = array<i32: 0>} : vector<8x8xi32>
    %13 = tpu.iota {dimensions = array<i32: 1>} : vector<8x8xi32>
    %14 = arith.cmpi sle, %13, %12 : vector<8x8xi32>
    %15 = vector.shape_cast %14 : vector<8x8xi1> to vector<1x8x8xi1>
    %cst_7 = arith.constant -1.000000e+30 : f32
    %16 = vector.shape_cast %15 : vector<1x8x8xi1> to vector<1x8x8xi1>
    %17 = vector.broadcast %16 : vector<1x8x8xi1> to vector<2x8x8xi1>
    %18 = vector.broadcast %cst_7 : f32 to vector<2x8x8xf32>
    %19 = arith.select %17, %11, %18 : vector<2x8x8xi1>, vector<2x8x8xf32>
    %cst_8 = arith.constant dense<0xFF800000> : vector<2x8xf32>
    %20 = vector.multi_reduction <maximumf>, %19, %cst_8 [2] : vector<2x8x8xf32> to vector<2x8xf32>
    %21 = vector.shape_cast %20 : vector<2x8xf32> to vector<2x8x1xf32>
    %22 = vector.broadcast %21 : vector<2x8x1xf32> to vector<2x8x8xf32>
    %23 = arith.subf %19, %22 : vector<2x8x8xf32>
    %24 = math.exp %23 : vector<2x8x8xf32>
    %cst_9 = arith.constant dense<0.000000e+00> : vector<2x8xf32>
    %25 = vector.multi_reduction <add>, %24, %cst_9 [2] : vector<2x8x8xf32> to vector<2x8xf32>
    %26 = vector.shape_cast %25 : vector<2x8xf32> to vector<2x8x1xf32>
    %27 = tpu.reciprocal %26 {approx = true} : vector<2x8x1xf32> -> vector<2x8x1xf32>
    %28 = vector.broadcast %27 : vector<2x8x1xf32> to vector<2x8x8xf32>
    %29 = arith.mulf %24, %28 : vector<2x8x8xf32>
    %cst_10 = arith.constant dense<0.000000e+00> : vector<2x8x128xf32>
    %30 = tpu.matmul %29, %10, %cst_10 {dimension_numbers = #tpu.dot_dimension_numbers<[2], [1], [1], [2], [0, 0, 0, 1, 1, 2], [0], [0]>} : vector<2x8x8xf32>, vector<2x8x128xf32>, vector<2x8x128xf32> -> vector<2x8x128xf32>
    %c0_11 = arith.constant 0 : index
    %c0_12 = arith.constant 0 : index
    %c0_13 = arith.constant 0 : index
    %31 = vector.load %arg4[%c0_11, %c0_12, %c0_13] : memref<2x8x128xf32, #tpu.memory_space<vmem>>, vector<2x8x128xf32>
    tpu.vector_store %arg4[%c0_11, %c0_12, %c0_13], %30 {strides = array<i32>} : memref<2x8x128xf32, #tpu.memory_space<vmem>>, vector<2x8x128xf32>,
    return
  }
  func.func @transform_0(%arg0: i32) -> (i32, i32, i32) {
    %c0_i32 = arith.constant 0 : i32
    %c0_i32_0 = arith.constant 0 : i32
    %c0_i32_1 = arith.constant 0 : i32
    return %arg0, %c0_i32, %c0_i32_0 : i32, i32, i32
  }
  func.func @transform_1(%arg0: i32) -> (i32, i32) {
    %c0_i32 = arith.constant 0 : i32
    %c0_i32_0 = arith.constant 0 : i32
    %c0_i32_1 = arith.constant 0 : i32
    return %c0_i32, %c0_i32_0 : i32, i32
  }
  func.func @transform_2(%arg0: i32) -> (i32, i32) {
    %c0_i32 = arith.constant 0 : i32
    %c0_i32_0 = arith.constant 0 : i32
    %c0_i32_1 = arith.constant 0 : i32
    return %c0_i32, %c0_i32_0 : i32, i32
  }
  func.func @transform_3(%arg0: i32) -> (i32, i32, i32) {
    %c0_i32 = arith.constant 0 : i32
    %c0_i32_0 = arith.constant 0 : i32
    %c0_i32_1 = arith.constant 0 : i32
    return %arg0, %c0_i32, %c0_i32_0 : i32, i32, i32
  }
}

</mosaic_0001>

<llo_original>
// kernel: multihead_forward.1
$region0: #{multihead_forward.1}
  #allocation0 [shape = 'u32[]', space=smem, size = 0x4, offset = 0x4, fixed_abs, tag = 'smem constant byte address 0x4 - core index']
  #allocation1 [shape = 'u32[144,128]{1,0:T(1,128)}', space=vmem, size = 0x12000, scoped, tag = 'internal scratch']
  %s0 = inlined_call_operand.vmem [shape: f32[2,8,32], index: 0, kind: input, shape index: {}]
  %s1 = inlined_call_operand.vmem [shape: f32[32,384], index: 1, kind: input, shape index: {}]
  %s2 = inlined_call_operand.vmem [shape: f32[1,384], index: 2, kind: input, shape index: {}]
  %s3 = inlined_call_operand.hbm [shape: f32[2,8,128], index: 3, kind: output, shape index: {}]
  %s4 = sld [smem:[#allocation0]]
  $region22: #{multihead_forward.1} parent=0
    _
  %s6 = ssub.s32 1, %s4
  %s7 = scalar_select 0, %s6, %s4
  $region1: #{multihead_forward.1} parent=0
    #allocation2 [shape = 'u8[8192]{0}', space=vmem, size = 0x2000, scoped, tag = 'output window, operand 0, single buffered']
    #allocation3 [shape = 's32[1]{0}', space=sflag, size = 0x4, scoped, tag = 'scoped memory for multihead_forward.1']
    %8 = vsyncpa [#allocation3], 0
    // Predicated region
    $region2: #{multihead_forward.1} parent=1 // pred_check
      _
    $region3: #{multihead_forward.1} parent=1 // pred_check_branch
      %10 = sbr.rel (0) target = $region5
    $region4: #{multihead_forward.1} parent=1 // pred_region
      _
    $region5: #{multihead_forward.1} parent=1 // pred_fallthru
      _
    // Predicated region
    $region6: #{multihead_forward.1} parent=1 // pred_check
      _
    $region7: #{multihead_forward.1} parent=1 // pred_check_branch
      %12 = sbr.rel (0) target = $region9
    $region8: #{multihead_forward.1} parent=1 // pred_region
      _
    $region9: #{multihead_forward.1} parent=1 // pred_fallthru
      _
    // Predicated region
    $region10: #{multihead_forward.1} parent=1 // pred_check
      _
    $region11: #{multihead_forward.1} parent=1 // pred_check_branch
      %14 = sbr.rel (0) target = $region13
    $region12: #{multihead_forward.1} parent=1 // pred_region
      _
    $region13: #{multihead_forward.1} parent=1 // pred_fallthru
      _
    %v15 = vld [vmem:[%s0] sm:$0xff]
    %v16 = vld [vmem:[%s0 + $0x8] sm:$0xff]
    %v17 = vld [vmem:[%s1] sm:$0xff]
    %v18 = vld [vmem:[%s1 + $0x8] sm:$0xff]
    %v19 = vld [vmem:[%s1 + $0x10] sm:$0xff]
    %v20 = vld [vmem:[%s1 + $0x18] sm:$0xff]
    %v21 = vld [vmem:[%s1 + $0x20] sm:$0xff]
    %v22 = vld [vmem:[%s1 + $0x28] sm:$0xff]
    %v23 = vld [vmem:[%s1 + $0x30] sm:$0xff]
    %v24 = vld [vmem:[%s1 + $0x38] sm:$0xff]
    %v25 = vld [vmem:[%s1 + $0x40] sm:$0xff]
    %v26 = vld [vmem:[%s1 + $0x48] sm:$0xff]
    %v27 = vld [vmem:[%s1 + $0x50] sm:$0xff]
    %v28 = vld [vmem:[%s1 + $0x58] sm:$0xff]
    %v29 = vld [vmem:[%s2] sm:$0x7]
    %v31 = vlaneseq
    %v32 = vshrl.u32 %v31, 7
    %v33 = vsub.s32 0, %v32
    %v34 = vrot.slane %v29, %v33
    %v35 = vlaneseq
    %v36 = vshrl.u32 %v35, 7
    %v37 = vsub.s32 1, %v36
    %v38 = vrot.slane %v29, %v37
    %v39 = vlaneseq
    %v40 = vshrl.u32 %v39, 7
    %v41 = vsub.s32 2, %v40
    %v42 = vrot.slane %v29, %v41
    %vm46 = vcmask 261120
    %v48 = vsel %vm46, %v15, 0
    %v51 = vsel %vm46, %v16, 0
    %53 = vmatprep.subr.mxu0 0.0
    %54 = vmatpush1.msra.mxu0 0.0
    %55 = vmatprep.subr.mxu0 0.0
    %56 = vmatpush1.msra.mxu0 0.0
    %57 = vmatprep.subr.mxu0 0.0
    %58 = vmatpush1.msra.mxu0 0.0
    %59 = vmatprep.subr.mxu0 0.0
    %60 = vmatpush1.msra.mxu0 0.0
    %61 = vmatprep.subr.mxu0 0.0
    %62 = vmatpush1.msra.mxu0 0.0
    %63 = vmatprep.subr.mxu0 0.0
    %64 = vmatpush1.msra.mxu0 0.0
    %65 = vmatprep.subr.mxu0 0.0
    %66 = vmatpush1.msra.mxu0 0.0
    %67 = vmatprep.subr.mxu0 0.0
    %68 = vmatpush1.msra.mxu0 0.0
    %69 = vmatprep.subr.mxu0 0.0
    %70 = vmatpush1.msra.mxu0 0.0
    %71 = vmatprep.subr.mxu0 0.0
    %72 = vmatpush1.msra.mxu0 0.0
    %73 = vmatprep.subr.mxu0 0.0
    %74 = vmatpush1.msra.mxu0 0.0
    %75 = vmatprep.subr.mxu0 0.0
    %76 = vmatpush1.msra.mxu0 0.0
    %77 = vmatprep.subr.mxu0 %v27
    %78 = vmatpush1.msra.mxu0 %v26
    %79 = vmatprep.subr.mxu0 %v24
    %80 = vmatpush1.msra.mxu0 %v23
    %81 = vmatprep.subr.mxu0 %v21
    %82 = vmatpush1.msra.mxu0 %v20
    %83 = vmatprep.subr.mxu0 %v18
    %84 = vmatpush1.msra.mxu0 %v17
    %85 = vmatprep.subr.mxu0 0.0
    %86 = vmatpush2.msra.mxu0 0.0
    %87 = vmatprep.subr.mxu0 0.0
    %88 = vmatpush2.msra.mxu0 0.0
    %89 = vmatprep.subr.mxu0 0.0
    %90 = vmatpush2.msra.mxu0 0.0
    %91 = vmatprep.subr.mxu0 0.0
    %92 = vmatpush2.msra.mxu0 0.0
    %93 = vmatprep.subr.mxu0 0.0
    %94 = vmatpush2.msra.mxu0 0.0
    %95 = vmatprep.subr.mxu0 0.0
    %96 = vmatpush2.msra.mxu0 0.0
    %97 = vmatprep.subr.mxu0 0.0
    %98 = vmatpush2.msra.mxu0 0.0
    %99 = vmatprep.subr.mxu0 0.0
    %100 = vmatpush2.msra.mxu0 0.0
    %101 = vmatprep.subr.mxu0 0.0
    %102 = vmatpush2.msra.mxu0 0.0
    %103 = vmatprep.subr.mxu0 0.0
    %104 = vmatpush2.msra.mxu0 0.0
    %105 = vmatprep.subr.mxu0 0.0
    %106 = vmatpush2.msra.mxu0 0.0
    %107 = vmatprep.subr.mxu0 0.0
    %108 = vmatpush2.msra.mxu0 0.0
    %109 = vmatprep.subr.mxu0 0.0
    %110 = vmatpush2.msra.mxu0 0.0
    %111 = vmatprep.subr.mxu0 0.0
    %112 = vmatpush2.msra.mxu0 0.0
    %113 = vmatprep.subr.mxu0 0.0
    %114 = vmatpush2.msra.mxu0 0.0
    %115 = vmatprep.subr.mxu0 0.0
    %116 = vmatpush2.msra.mxu0 0.0
    %117 = vmatprep.mubr.f32.mxu0 0.0
    %118 = vmatmul.mubr.f32.gmra.mxu0 %v48
    %v119 = vpop.f32.mrf.mxu0
    %v120 = vadd.f32 %v34, %v119
    %v121 = vpop.f32.mrf.mxu0
    %v122 = vadd.f32 %v38, %v121
    %123 = vmatprep.mubr.f32.mxu0 0.0
    %124 = vmatmul.mubr.f32.gmra.mxu0 %v51
    %v125 = vpop.f32.mrf.mxu0
    %v126 = vadd.f32 %v34, %v125
    %v127 = vpop.f32.mrf.mxu0
    %v128 = vadd.f32 %v38, %v127
    %129 = vdwg.mxu0
    %130 = vmatprep.subr.mxu0 0.0
    %131 = vmatpush1.msra.mxu0 0.0
    %132 = vmatprep.subr.mxu0 0.0
    %133 = vmatpush1.msra.mxu0 0.0
    %134 = vmatprep.subr.mxu0 0.0
    %135 = vmatpush1.msra.mxu0 0.0
    %136 = vmatprep.subr.mxu0 0.0
    %137 = vmatpush1.msra.mxu0 0.0
    %138 = vmatprep.subr.mxu0 0.0
    %139 = vmatpush1.msra.mxu0 0.0
    %140 = vmatprep.subr.mxu0 0.0
    %141 = vmatpush1.msra.mxu0 0.0
    %142 = vmatprep.subr.mxu0 0.0
    %143 = vmatpush1.msra.mxu0 0.0
    %144 = vmatprep.subr.mxu0 0.0
    %145 = vmatpush1.msra.mxu0 0.0
    %146 = vmatprep.subr.mxu0 0.0
    %147 = vmatpush1.msra.mxu0 0.0
    %148 = vmatprep.subr.mxu0 0.0
    %149 = vmatpush1.msra.mxu0 0.0
    %150 = vmatprep.subr.mxu0 0.0
    %151 = vmatpush1.msra.mxu0 0.0
    %152 = vmatprep.subr.mxu0 0.0
    %153 = vmatpush1.msra.mxu0 0.0
    %154 = vmatprep.subr.mxu0 0.0
    %155 = vmatpush1.msra.mxu0 %v28
    %156 = vmatprep.subr.mxu0 0.0
    %157 = vmatpush1.msra.mxu0 %v25
    %158 = vmatprep.subr.mxu0 0.0
    %159 = vmatpush1.msra.mxu0 %v22
    %160 = vmatprep.subr.mxu0 0.0
    %161 = vmatpush1.msra.mxu0 %v19
    %162 = vmatprep.subr.mxu0 0.0
    %163 = vmatpush2.msra.mxu0 0.0
    %164 = vmatprep.subr.mxu0 0.0
    %165 = vmatpush2.msra.mxu0 0.0
    %166 = vmatprep.subr.mxu0 0.0
    %167 = vmatpush2.msra.mxu0 0.0
    %168 = vmatprep.subr.mxu0 0.0
    %169 = vmatpush2.msra.mxu0 0.0
    %170 = vmatprep.subr.mxu0 0.0
    %171 = vmatpush2.msra.mxu0 0.0
    %172 = vmatprep.subr.mxu0 0.0
    %173 = vmatpush2.msra.mxu0 0.0
    %174 = vmatprep.subr.mxu0 0.0
    %175 = vmatpush2.msra.mxu0 0.0
    %176 = vmatprep.subr.mxu0 0.0
    %177 = vmatpush2.msra.mxu0 0.0
    %178 = vmatprep.subr.mxu0 0.0
    %179 = vmatpush2.msra.mxu0 0.0
    %180 = vmatprep.subr.mxu0 0.0
    %181 = vmatpush2.msra.mxu0 0.0
    %182 = vmatprep.subr.mxu0 0.0
    %183 = vmatpush2.msra.mxu0 0.0
    %184 = vmatprep.subr.mxu0 0.0
    %185 = vmatpush2.msra.mxu0 0.0
    %186 = vmatprep.subr.mxu0 0.0
    %187 = vmatpush2.msra.mxu0 0.0
    %188 = vmatprep.subr.mxu0 0.0
    %189 = vmatpush2.msra.mxu0 0.0
    %190 = vmatprep.subr.mxu0 0.0
    %191 = vmatpush2.msra.mxu0 0.0
    %192 = vmatprep.subr.mxu0 0.0
    %193 = vmatpush2.msra.mxu0 0.0
    %194 = vmatprep.mubr.f32.mxu0 0.0
    %195 = vmatmul.mubr.f32.gmra.mxu0 %v48
    %v196 = vpop.f32.mrf.mxu0
    %v197 = vadd.f32 %v42, %v196
    %v198 = vpop.f32.mrf.mxu0
    %199 = vmatprep.mubr.f32.mxu0 0.0
    %200 = vmatmul.mubr.f32.gmra.mxu0 %v51
    %v201 = vpop.f32.mrf.mxu0
    %v202 = vadd.f32 %v42, %v201
    %v203 = vpop.f32.mrf.mxu0
    %204 = vdwg.mxu0
    %205 = vmatprep.subr.mxu0 0.0
    %206 = vmatpush1.xpose.msra.mxu0 0.0
    %207 = vmatprep.subr.mxu0 0.0
    %208 = vmatpush1.xpose.msra.mxu0 0.0
    %209 = vmatprep.subr.mxu0 0.0
    %210 = vmatpush1.xpose.msra.mxu0 0.0
    %211 = vmatprep.subr.mxu0 0.0
    %212 = vmatpush1.xpose.msra.mxu0 0.0
    %213 = vmatprep.subr.mxu0 0.0
    %214 = vmatpush1.xpose.msra.mxu0 0.0
    %215 = vmatprep.subr.mxu0 0.0
    %216 = vmatpush1.xpose.msra.mxu0 0.0
    %217 = vmatprep.subr.mxu0 0.0
    %218 = vmatpush1.xpose.msra.mxu0 0.0
    %219 = vmatprep.subr.mxu0 0.0
    %220 = vmatpush1.xpose.msra.mxu0 0.0
    %221 = vmatprep.subr.mxu0 0.0
    %222 = vmatpush1.xpose.msra.mxu0 0.0
    %223 = vmatprep.subr.mxu0 0.0
    %224 = vmatpush1.xpose.msra.mxu0 0.0
    %225 = vmatprep.subr.mxu0 0.0
    %226 = vmatpush1.xpose.msra.mxu0 0.0
    %227 = vmatprep.subr.mxu0 0.0
    %228 = vmatpush1.xpose.msra.mxu0 0.0
    %229 = vmatprep.subr.mxu0 0.0
    %230 = vmatpush1.xpose.msra.mxu0 0.0
    %231 = vmatprep.subr.mxu0 0.0
    %232 = vmatpush1.xpose.msra.mxu0 0.0
    %233 = vmatprep.subr.mxu0 0.0
    %234 = vmatpush1.xpose.msra.mxu0 0.0
    %235 = vmatprep.subr.mxu0 0.0
    %236 = vmatpush1.xpose.msra.mxu0 %v122
    %237 = vmatprep.subr.mxu0 0.0
    %238 = vmatpush2.xpose.msra.mxu0 0.0
    %239 = vmatprep.subr.mxu0 0.0
    %240 = vmatpush2.xpose.msra.mxu0 0.0
    %241 = vmatprep.subr.mxu0 0.0
    %242 = vmatpush2.xpose.msra.mxu0 0.0
    %243 = vmatprep.subr.mxu0 0.0
    %244 = vmatpush2.xpose.msra.mxu0 0.0
    %245 = vmatprep.subr.mxu0 0.0
    %246 = vmatpush2.xpose.msra.mxu0 0.0
    %247 = vmatprep.subr.mxu0 0.0
    %248 = vmatpush2.xpose.msra.mxu0 0.0
    %249 = vmatprep.subr.mxu0 0.0
    %250 = vmatpush2.xpose.msra.mxu0 0.0
    %251 = vmatprep.subr.mxu0 0.0
    %252 = vmatpush2.xpose.msra.mxu0 0.0
    %253 = vmatprep.subr.mxu0 0.0
    %254 = vmatpush2.xpose.msra.mxu0 0.0
    %255 = vmatprep.subr.mxu0 0.0
    %256 = vmatpush2.xpose.msra.mxu0 0.0
    %257 = vmatprep.subr.mxu0 0.0
    %258 = vmatpush2.xpose.msra.mxu0 0.0
    %259 = vmatprep.subr.mxu0 0.0
    %260 = vmatpush2.xpose.msra.mxu0 0.0
    %261 = vmatprep.subr.mxu0 0.0
    %262 = vmatpush2.xpose.msra.mxu0 0.0
    %263 = vmatprep.subr.mxu0 0.0
    %264 = vmatpush2.xpose.msra.mxu0 0.0
    %265 = vmatprep.subr.mxu0 0.0
    %266 = vmatpush2.xpose.msra.mxu0 0.0
    %267 = vmatprep.subr.mxu0 0.0
    %268 = vmatpush2.xpose.msra.mxu0 0.0
    %269 = vmatprep.mubr.f32.mxu0 0.0
    %270 = vmatmul.mubr.f32.gmra.mxu0 %v120
    %v271 = vpop.f32.mrf.mxu0
    %v272 = vadd.f32 0.0, %v271
    %v273 = vpop.f32.mrf.mxu0
    %274 = vdwg.mxu0
    %275 = vmatprep.subr.mxu0 0.0
    %276 = vmatpush1.xpose.msra.mxu0 0.0
    %277 = vmatprep.subr.mxu0 0.0
    %278 = vmatpush1.xpose.msra.mxu0 0.0
    %279 = vmatprep.subr.mxu0 0.0
    %280 = vmatpush1.xpose.msra.mxu0 0.0
    %281 = vmatprep.subr.mxu0 0.0
    %282 = vmatpush1.xpose.msra.mxu0 0.0
    %283 = vmatprep.subr.mxu0 0.0
    %284 = vmatpush1.xpose.msra.mxu0 0.0
    %285 = vmatprep.subr.mxu0 0.0
    %286 = vmatpush1.xpose.msra.mxu0 0.0
    %287 = vmatprep.subr.mxu0 0.0
    %288 = vmatpush1.xpose.msra.mxu0 0.0
    %289 = vmatprep.subr.mxu0 0.0
    %290 = vmatpush1.xpose.msra.mxu0 0.0
    %291 = vmatprep.subr.mxu0 0.0
    %292 = vmatpush1.xpose.msra.mxu0 0.0
    %293 = vmatprep.subr.mxu0 0.0
    %294 = vmatpush1.xpose.msra.mxu0 0.0
    %295 = vmatprep.subr.mxu0 0.0
    %296 = vmatpush1.xpose.msra.mxu0 0.0
    %297 = vmatprep.subr.mxu0 0.0
    %298 = vmatpush1.xpose.msra.mxu0 0.0
    %299 = vmatprep.subr.mxu0 0.0
    %300 = vmatpush1.xpose.msra.mxu0 0.0
    %301 = vmatprep.subr.mxu0 0.0
    %302 = vmatpush1.xpose.msra.mxu0 0.0
    %303 = vmatprep.subr.mxu0 0.0
    %304 = vmatpush1.xpose.msra.mxu0 0.0
    %305 = vmatprep.subr.mxu0 0.0
    %306 = vmatpush1.xpose.msra.mxu0 %v128
    %307 = vmatprep.subr.mxu0 0.0
    %308 = vmatpush2.xpose.msra.mxu0 0.0
    %309 = vmatprep.subr.mxu0 0.0
    %310 = vmatpush2.xpose.msra.mxu0 0.0
    %311 = vmatprep.subr.mxu0 0.0
    %312 = vmatpush2.xpose.msra.mxu0 0.0
    %313 = vmatprep.subr.mxu0 0.0
    %314 = vmatpush2.xpose.msra.mxu0 0.0
    %315 = vmatprep.subr.mxu0 0.0
    %316 = vmatpush2.xpose.msra.mxu0 0.0
    %317 = vmatprep.subr.mxu0 0.0
    %318 = vmatpush2.xpose.msra.mxu0 0.0
    %319 = vmatprep.subr.mxu0 0.0
    %320 = vmatpush2.xpose.msra.mxu0 0.0
    %321 = vmatprep.subr.mxu0 0.0
    %322 = vmatpush2.xpose.msra.mxu0 0.0
    %323 = vmatprep.subr.mxu0 0.0
    %324 = vmatpush2.xpose.msra.mxu0 0.0
    %325 = vmatprep.subr.mxu0 0.0
    %326 = vmatpush2.xpose.msra.mxu0 0.0
    %327 = vmatprep.subr.mxu0 0.0
    %328 = vmatpush2.xpose.msra.mxu0 0.0
    %329 = vmatprep.subr.mxu0 0.0
    %330 = vmatpush2.xpose.msra.mxu0 0.0
    %331 = vmatprep.subr.mxu0 0.0
    %332 = vmatpush2.xpose.msra.mxu0 0.0
    %333 = vmatprep.subr.mxu0 0.0
    %334 = vmatpush2.xpose.msra.mxu0 0.0
    %335 = vmatprep.subr.mxu0 0.0
    %336 = vmatpush2.xpose.msra.mxu0 0.0
    %337 = vmatprep.subr.mxu0 0.0
    %338 = vmatpush2.xpose.msra.mxu0 0.0
    %339 = vmatprep.mubr.f32.mxu0 0.0
    %340 = vmatmul.mubr.f32.gmra.mxu0 %v126
    %v341 = vpop.f32.mrf.mxu0
    %v342 = vadd.f32 0.0, %v341
    %v343 = vpop.f32.mrf.mxu0
    %344 = vdwg.mxu0
    %v345 = vlaneseq
    %v346 = vshrl.u32 %v345, 7
    %v347 = vlaneseq
    %v348 = vand.u32 %v347, 127
    %vm349 = vcmp.le.s32.totalorder %v348, %v346
    %v350 = vsel %vm349, 1, 0
    %vm351 = vcmp.eq.s32.totalorder %v350, 1
    %v352 = vsel %vm351, %v272, -1e+30
    %v353 = vsel %vm351, %v342, -1e+30
    %vm354 = vcmask 64512
    %v355 = vsel %vm354, %v352, -inf
    %356 = vmax.xlane.f32.xlu0 %v355
    %v357 = vpop.xlane.xlu0 %356
    %v358 = vsel %vm354, %v353, -inf
    %359 = vmax.xlane.f32.xlu0 %v358
    %v360 = vpop.xlane.xlu0 %359
    %v361 = vsub.f32 %v352, %v357
    %v362 = vsub.f32 %v353, %v360
    %v363 = vmul.f32 %v361, 1.442695
    %v364 = vpow.pop %v363
    %v365 = vmul.f32 %v362, 1.442695
    %v366 = vpow.pop %v365
    %v367 = vsel %vm354, %v364, 0.0
    %368 = vadd.xlane.f32.xlu0 %v367
    %v369 = vpop.xlane.xlu0 %368
    %v370 = vsel %vm354, %v366, 0.0
    %371 = vadd.xlane.f32.xlu0 %v370
    %v372 = vpop.xlane.xlu0 %371
    %v373 = vrcp.pop %v369
    %v374 = vrcp.pop %v372
    %v375 = vmul.f32 %v364, %v373
    %v376 = vmul.f32 %v366, %v374
    %v378 = vsel %vm354, %v375, 0
    %380 = vmatprep.subr.mxu0 0.0
    %381 = vmatpush1.msra.mxu0 0.0
    %382 = vmatprep.subr.mxu0 0.0
    %383 = vmatpush1.msra.mxu0 0.0
    %384 = vmatprep.subr.mxu0 0.0
    %385 = vmatpush1.msra.mxu0 0.0
    %386 = vmatprep.subr.mxu0 0.0
    %387 = vmatpush1.msra.mxu0 0.0
    %388 = vmatprep.subr.mxu0 0.0
    %389 = vmatpush1.msra.mxu0 0.0
    %390 = vmatprep.subr.mxu0 0.0
    %391 = vmatpush1.msra.mxu0 0.0
    %392 = vmatprep.subr.mxu0 0.0
    %393 = vmatpush1.msra.mxu0 0.0
    %394 = vmatprep.subr.mxu0 0.0
    %395 = vmatpush1.msra.mxu0 0.0
    %396 = vmatprep.subr.mxu0 0.0
    %397 = vmatpush1.msra.mxu0 0.0
    %398 = vmatprep.subr.mxu0 0.0
    %399 = vmatpush1.msra.mxu0 0.0
    %400 = vmatprep.subr.mxu0 0.0
    %401 = vmatpush1.msra.mxu0 0.0
    %402 = vmatprep.subr.mxu0 0.0
    %403 = vmatpush1.msra.mxu0 0.0
    %404 = vmatprep.subr.mxu0 0.0
    %405 = vmatpush1.msra.mxu0 0.0
    %406 = vmatprep.subr.mxu0 0.0
    %407 = vmatpush1.msra.mxu0 0.0
    %408 = vmatprep.subr.mxu0 0.0
    %409 = vmatpush1.msra.mxu0 0.0
    %410 = vmatprep.subr.mxu0 0.0
    %411 = vmatpush1.msra.mxu0 %v197
    %412 = vmatprep.subr.mxu0 0.0
    %413 = vmatpush2.msra.mxu0 0.0
    %414 = vmatprep.subr.mxu0 0.0
    %415 = vmatpush2.msra.mxu0 0.0
    %416 = vmatprep.subr.mxu0 0.0
    %417 = vmatpush2.msra.mxu0 0.0
    %418 = vmatprep.subr.mxu0 0.0
    %419 = vmatpush2.msra.mxu0 0.0
    %420 = vmatprep.subr.mxu0 0.0
    %421 = vmatpush2.msra.mxu0 0.0
    %422 = vmatprep.subr.mxu0 0.0
    %423 = vmatpush2.msra.mxu0 0.0
    %424 = vmatprep.subr.mxu0 0.0
    %425 = vmatpush2.msra.mxu0 0.0
    %426 = vmatprep.subr.mxu0 0.0
    %427 = vmatpush2.msra.mxu0 0.0
    %428 = vmatprep.subr.mxu0 0.0
    %429 = vmatpush2.msra.mxu0 0.0
    %430 = vmatprep.subr.mxu0 0.0
    %431 = vmatpush2.msra.mxu0 0.0
    %432 = vmatprep.subr.mxu0 0.0
    %433 = vmatpush2.msra.mxu0 0.0
    %434 = vmatprep.subr.mxu0 0.0
    %435 = vmatpush2.msra.mxu0 0.0
    %436 = vmatprep.subr.mxu0 0.0
    %437 = vmatpush2.msra.mxu0 0.0
    %438 = vmatprep.subr.mxu0 0.0
    %439 = vmatpush2.msra.mxu0 0.0
    %440 = vmatprep.subr.mxu0 0.0
    %441 = vmatpush2.msra.mxu0 0.0
    %442 = vmatprep.subr.mxu0 0.0
    %443 = vmatpush2.msra.mxu0 0.0
    %444 = vmatprep.mubr.f32.mxu0 0.0
    %445 = vmatmul.mubr.f32.gmra.mxu0 %v378
    %v446 = vpop.f32.mrf.mxu0
    %v447 = vadd.f32 0.0, %v446
    %v448 = vpop.f32.mrf.mxu0
    %449 = vdwg.mxu0
    %v451 = vsel %vm354, %v376, 0
    %453 = vmatprep.subr.mxu0 0.0
    %454 = vmatpush1.msra.mxu0 0.0
    %455 = vmatprep.subr.mxu0 0.0
    %456 = vmatpush1.msra.mxu0 0.0
    %457 = vmatprep.subr.mxu0 0.0
    %458 = vmatpush1.msra.mxu0 0.0
    %459 = vmatprep.subr.mxu0 0.0
    %460 = vmatpush1.msra.mxu0 0.0
    %461 = vmatprep.subr.mxu0 0.0
    %462 = vmatpush1.msra.mxu0 0.0
    %463 = vmatprep.subr.mxu0 0.0
    %464 = vmatpush1.msra.mxu0 0.0
    %465 = vmatprep.subr.mxu0 0.0
    %466 = vmatpush1.msra.mxu0 0.0
    %467 = vmatprep.subr.mxu0 0.0
    %468 = vmatpush1.msra.mxu0 0.0
    %469 = vmatprep.subr.mxu0 0.0
    %470 = vmatpush1.msra.mxu0 0.0
    %471 = vmatprep.subr.mxu0 0.0
    %472 = vmatpush1.msra.mxu0 0.0
    %473 = vmatprep.subr.mxu0 0.0
    %474 = vmatpush1.msra.mxu0 0.0
    %475 = vmatprep.subr.mxu0 0.0
    %476 = vmatpush1.msra.mxu0 0.0
    %477 = vmatprep.subr.mxu0 0.0
    %478 = vmatpush1.msra.mxu0 0.0
    %479 = vmatprep.subr.mxu0 0.0
    %480 = vmatpush1.msra.mxu0 0.0
    %481 = vmatprep.subr.mxu0 0.0
    %482 = vmatpush1.msra.mxu0 0.0
    %483 = vmatprep.subr.mxu0 0.0
    %484 = vmatpush1.msra.mxu0 %v202
    %485 = vmatprep.subr.mxu0 0.0
    %486 = vmatpush2.msra.mxu0 0.0
    %487 = vmatprep.subr.mxu0 0.0
    %488 = vmatpush2.msra.mxu0 0.0
    %489 = vmatprep.subr.mxu0 0.0
    %490 = vmatpush2.msra.mxu0 0.0
    %491 = vmatprep.subr.mxu0 0.0
    %492 = vmatpush2.msra.mxu0 0.0
    %493 = vmatprep.subr.mxu0 0.0
    %494 = vmatpush2.msra.mxu0 0.0
    %495 = vmatprep.subr.mxu0 0.0
    %496 = vmatpush2.msra.mxu0 0.0
    %497 = vmatprep.subr.mxu0 0.0
    %498 = vmatpush2.msra.mxu0 0.0
    %499 = vmatprep.subr.mxu0 0.0
    %500 = vmatpush2.msra.mxu0 0.0
    %501 = vmatprep.subr.mxu0 0.0
    %502 = vmatpush2.msra.mxu0 0.0
    %503 = vmatprep.subr.mxu0 0.0
    %504 = vmatpush2.msra.mxu0 0.0
    %505 = vmatprep.subr.mxu0 0.0
    %506 = vmatpush2.msra.mxu0 0.0
    %507 = vmatprep.subr.mxu0 0.0
    %508 = vmatpush2.msra.mxu0 0.0
    %509 = vmatprep.subr.mxu0 0.0
    %510 = vmatpush2.msra.mxu0 0.0
    %511 = vmatprep.subr.mxu0 0.0
    %512 = vmatpush2.msra.mxu0 0.0
    %513 = vmatprep.subr.mxu0 0.0
    %514 = vmatpush2.msra.mxu0 0.0
    %515 = vmatprep.subr.mxu0 0.0
    %516 = vmatpush2.msra.mxu0 0.0
    %517 = vmatprep.mubr.f32.mxu0 0.0
    %518 = vmatmul.mubr.f32.gmra.mxu0 %v451
    %v519 = vpop.f32.mrf.mxu0
    %v520 = vadd.f32 0.0, %v519
    %v521 = vpop.f32.mrf.mxu0
    %522 = vdwg.mxu0
    %523 = vst [vmem:[#allocation2] sm:$0xff] %v447
    %524 = vst [vmem:[#allocation2 + $0x8] sm:$0xff] %v520
    // Predicated region
    $region14: #{multihead_forward.1} parent=1 // pred_check
      _
    $region15: #{multihead_forward.1} parent=1 // pred_check_branch
      %526 = sbr.rel (0) target = $region17
    $region16: #{multihead_forward.1} parent=1 // pred_region
      %s528 = ssub.s32 256, 256
      %529 = vsyncadd [#allocation3], %s528
      %s530 = sshll.u32 [#allocation2], 4
      %s531 = int_to_ptr.vmem [resolvable:$true] %s530
      %536 = dma.vmem_to_hbm [thread:$0]  %s531, 256, %s3, [#allocation3], 128, 128, 8
    $region17: #{multihead_forward.1} parent=1 // pred_fallthru
      _
    // Predicated region
    $region18: #{multihead_forward.1} parent=1 // pred_check
      _
    $region19: #{multihead_forward.1} parent=1 // pred_check_branch
      %538 = sbr.rel (0) target = $region21
    $region20: #{multihead_forward.1} parent=1 // pred_region
      %539 = dma.done [#allocation3], 256
    $region21: #{multihead_forward.1} parent=1 // pred_fallthru
      _
    %540 = vsyncpa [#allocation3], 1

</llo_original>
